<compile_context>
chip_gen: v5e
topology: v5e:2x2
jax: 0.10.0
libtpu: 0.0.40
codegen_flags: <defaults>
</compile_context>

<pallas_src>
import functools

import jax
import jax.numpy as jnp
from jax.experimental import pallas as pl
from jax.experimental.pallas import tpu as pltpu

_TM_CAP = 1024                      # rows per elementwise/GEMM tile (v6e can go higher;
                                    # keep <=1024 and VMEM budget ~32MB so v7x (64MB) fits)
_VMEM_LIMIT = 32 * 1024 * 1024      # explicit scoped-VMEM budget, safe on v5e/v6e/v7x
_TAPS = ((3, 1), (2, 0))            # kernel taps per output parity (k=4, stride=2, pad=1)
_BN_EPS = 1e-5


def _round_up(x, m):
    return ((x + m - 1) // m) * m


def _tile_rows(m):
    tm = min(_TM_CAP, _round_up(m, 16))     # 16-sublane aligned (bf16 packing)
    return tm, _round_up(m, tm)


def _pad_rows(x, rows):
    return x if x.shape[0] == rows else jnp.pad(x, ((0, rows - x.shape[0]), (0, 0)))


# ----------------------------------------------------------------------------
# Pallas kernels
# ----------------------------------------------------------------------------

def _initial_gemm_stats_kernel(x_ref, w_ref, y_ref, stats_ref):
    # Initial 1x1 -> 4x4 ConvTranspose: one lane-dense GEMM (N = 16 * Coutp) + per-column
    # sum / sum-of-squares for the BatchNorm batch statistics.
    y = jnp.dot(x_ref[...], w_ref[...], preferred_element_type=jnp.float32)
    y_ref[...] = y.astype(y_ref.dtype)
    stats_ref[0:1, :] = jnp.sum(y, axis=0, keepdims=True)
    stats_ref[1:2, :] = jnp.sum(y * y, axis=0, keepdims=True)


def _convt_s2_stats_kernel(xp_ref, w_ref, mask_ref, y_ref, stats_ref, *, H, W):
    # Stride-2 ConvTranspose for one batch element with fused patch extraction:
    #   xp_ref : (1, (H+2)*(W+2)+8, Cinp) bf16  row-flattened zero-padded input (+guard rows)
    #   w_ref  : (16, Cinp, Coutp)        bf16  per-(phase, tap) weights
    #   y_ref  : (1, 2, 2, H*(W+2), Coutp) bf16 per-parity outputs (2 junk cols per row)
    #   stats  : (1, 2, Coutp)            f32   per-batch-element (sum, sum_sq) partials
    Wp = W + 2
    R = H * Wp
    Cp = w_ref.shape[-1]
    mask = mask_ref[...]                                   # (R, 1) 1.0 for real columns
    s1 = jnp.zeros((1, Cp), jnp.float32)
    s2 = jnp.zeros((1, Cp), jnp.float32)
    for ph in range(2):
        for pw in range(2):
            acc = jnp.zeros((R, Cp), jnp.float32)
            for a in range(2):
                for b in range(2):
                    f0 = (ph + a) * Wp + (pw + b)          # static slab offset
                    xs = xp_ref[0, f0:f0 + R, :]           # (R, Cinp) bf16 shifted slab
                    idx = (ph * 2 + pw) * 4 + a * 2 + b
                    acc = acc + jnp.dot(xs, w_ref[idx],
                                        preferred_element_type=jnp.float32)
            accm = acc * mask                              # junk columns excluded from BN
            s1 = s1 + jnp.sum(accm, axis=0, keepdims=True)
            s2 = s2 + jnp.sum(accm * acc, axis=0, keepdims=True)
            y_ref[0, ph, pw] = acc.astype(y_ref.dtype)
    stats_ref[0, 0:1, :] = s1
    stats_ref[0, 1:2, :] = s2


def _convt_s2_tanh_kernel(xp_ref, w_ref, o_ref, *, H, W):
    # Final stride-2 ConvTranspose (no BN): same fused-patch GEMMs + tanh, bf16 output.
    Wp = W + 2
    R = H * Wp
    Cp = w_ref.shape[-1]
    for ph in range(2):
        for pw in range(2):
            acc = jnp.zeros((R, Cp), jnp.float32)
            for a in range(2):
                for b in range(2):
                    f0 = (ph + a) * Wp + (pw + b)
                    xs = xp_ref[0, f0:f0 + R, :]
                    idx = (ph * 2 + pw) * 4 + a * 2 + b
                    acc = acc + jnp.dot(xs, w_ref[idx],
                                        preferred_element_type=jnp.float32)
            o_ref[0, ph, pw] = jnp.tanh(acc).astype(o_ref.dtype)


def _bn_relu_kernel(y_ref, a_ref, b_ref, o_ref):
    # Second BN pass: y * scale + shift, then ReLU.  f32 math (v5e-safe), bf16 storage.
    # TODO(synk): fold this into the following layer's GEMM patch load (needs halo masking).
    y = y_ref[...].astype(jnp.float32)
    o_ref[...] = jnp.maximum(y * a_ref[...] + b_ref[...], 0.0).astype(o_ref.dtype)


def _qkv_proj_kernel(x_ref, w_ref, b_ref, q_ref, k_ref, v_ref):
    # Fused q|k|v 1x1-conv projection: one M-tiled lane-dense GEMM + bias, three
    # 128-aligned bf16 outputs (no misaligned qkv slicing downstream).
    Dp = q_ref.shape[-1]
    y = (jnp.dot(x_ref[...], w_ref[...], preferred_element_type=jnp.float32)
         + b_ref[...])
    q_ref[...] = y[:, :Dp].astype(q_ref.dtype)
    k_ref[...] = y[:, Dp:2 * Dp].astype(k_ref.dtype)
    v_ref[...] = y[:, 2 * Dp:].astype(v_ref.dtype)


def _cca_attn_kernel(x_ref, q_ref, k_ref, v_ref, gamma_ref, o_ref):
    # Criss-Cross attention for one batch element; bf16 MXU operands, f32 accumulation.
    # TODO(synk): for isize >= 128, tile over W (column strips) to bound VMEM on v7x.
    x = x_ref[0]                      # (H, W, Cp) bf16
    q = q_ref[0]                      # (H, W, Dp) bf16
    k = k_ref[0]
    v = v_ref[0]                      # (H, W, Cp) bf16
    H, W, _ = x.shape

    # Height-direction energies eH[h, w, s] = <q[h,w,:], k[s,w,:]>, diagonal h==s masked.
    eH = jnp.einsum('hwd,swd->hws', q, k, preferred_element_type=jnp.float32)
    row = jax.lax.broadcasted_iota(jnp.int32, (H, H), 0)
    col = jax.lax.broadcasted_iota(jnp.int32, (H, H), 1)
    eH = jnp.where((row == col)[:, None, :], -1e30, eH)    # finite stand-in for -inf
    # Width-direction energies eW[h, w, t] = <q[h,w,:], k[h,t,:]>.
    eW = jnp.einsum('hwd,htd->hwt', q, k, preferred_element_type=jnp.float32)

    # Joint softmax over the concatenated last axis [eH | eW] (length H + W).
    m = jnp.maximum(jnp.max(eH, axis=-1), jnp.max(eW, axis=-1))
    pH = jnp.exp(eH - m[:, :, None])
    pW = jnp.exp(eW - m[:, :, None])
    inv = pl.reciprocal(jnp.sum(pH, axis=-1) + jnp.sum(pW, axis=-1), approx=True)
    aH = (pH * inv[:, :, None]).astype(v.dtype)
    aW = (pW * inv[:, :, None]).astype(v.dtype)

    outH = jnp.einsum('hws,swc->hwc', aH, v, preferred_element_type=jnp.float32)
    outW = jnp.einsum('hwt,htc->hwc', aW, v, preferred_element_type=jnp.float32)
    o_ref[0] = (gamma_ref[0] * (outH + outW) + x.astype(jnp.float32)).astype(o_ref.dtype)


# ----------------------------------------------------------------------------
# BatchNorm helpers
# ----------------------------------------------------------------------------

def _bn_scale_shift(s1, s2, count, g, b, npad):
    mean = s1 / count
    var = jnp.maximum(s2 / count - mean * mean, 0.0)
    gpad = jnp.pad(g.astype(jnp.float32), (0, npad - g.shape[0]))
    bpad = jnp.pad(b.astype(jnp.float32), (0, npad - b.shape[0]))
    scale = gpad * jax.lax.rsqrt(var + _BN_EPS)
    shift = bpad - mean * scale
    return scale, shift


def _bn_relu_apply(y2d, scale, shift):
    M, Np = y2d.shape
    tm, Mp = _tile_rows(M)
    yp = _pad_rows(y2d, Mp)
    out = pl.pallas_call(
        _bn_relu_kernel,
        grid=(Mp // tm,),
        in_specs=[pl.BlockSpec((tm, Np), lambda m: (m, 0)),
                  pl.BlockSpec((1, Np), lambda m: (0, 0)),
                  pl.BlockSpec((1, Np), lambda m: (0, 0))],
        out_specs=pl.BlockSpec((tm, Np), lambda m: (m, 0)),
        out_shape=jax.ShapeDtypeStruct((Mp, Np), jnp.bfloat16),
        compiler_params=pltpu.CompilerParams(
            dimension_semantics=("parallel",), vmem_limit_bytes=_VMEM_LIMIT),
    )(yp, scale.reshape(1, Np).astype(jnp.float32),
      shift.reshape(1, Np).astype(jnp.float32))
    return out[:M]


# ----------------------------------------------------------------------------
# ConvTranspose2d layers
# ----------------------------------------------------------------------------

def _tap_weights_s2(w, cinp, coutp):
    """(16, Cinp, Coutp) per-(phase, tap) weights from the torch (Cin, Cout, 4, 4) kernel."""
    taps = []
    for ph in range(2):
        for pw in range(2):
            for a in range(2):
                for b in range(2):
                    taps.append(w[:, :, _TAPS[ph][a], _TAPS[pw][b]])
    wt = jnp.stack(taps, axis=0)                               # (16, Cin, Cout)
    cin, cout = w.shape[0], w.shape[1]
    wt = jnp.pad(wt, ((0, 0), (0, cinp - cin), (0, coutp - cout)))
    return wt.astype(jnp.bfloat16)


def _flatten_pad_input(x):
    """Zero-pad spatially by 1, row-flatten, add 8 zero guard rows (static slab slices)."""
    B, H, W, Cinp = x.shape
    xp = jnp.pad(x, ((0, 0), (1, 1), (1, 1), (0, 0)))
    xpf = xp.reshape(B, (H + 2) * (W + 2), Cinp)
    return jnp.pad(xpf, ((0, 0), (0, 8), (0, 0)))


def conv_transpose_initial_bn_relu(x2d, w, g, b):
    """ConvTranspose2d(k=4, s=1, p=0, 1x1 input) + BatchNorm2d(train) + ReLU."""
    B, Cin = x2d.shape
    Cout = w.shape[1]
    Cp = _round_up(Cout, 128)
    # (Cin, Cout, 4, 4) -> (Cin, 16*Cp) with (kh, kw, cout) flattened along lane-dense N.
    w2 = jnp.transpose(w, (0, 2, 3, 1))                        # (Cin, 4, 4, Cout)
    w2 = jnp.pad(w2, ((0, 0), (0, 0), (0, 0), (0, Cp - Cout)))
    w2 = w2.reshape(Cin, 16 * Cp).astype(jnp.bfloat16)
    Mp = _round_up(B, 8)
    xp = _pad_rows(x2d, Mp)
    N = 16 * Cp
    y, stats = pl.pallas_call(
        _initial_gemm_stats_kernel,
        grid=(1,),
        in_specs=[pl.BlockSpec((Mp, Cin), lambda i: (0, 0)),
                  pl.BlockSpec((Cin, N), lambda i: (0, 0))],
        out_specs=[pl.BlockSpec((Mp, N), lambda i: (0, 0)),
                   pl.BlockSpec((2, N), lambda i: (0, 0))],
        out_shape=[jax.ShapeDtypeStruct((Mp, N), jnp.bfloat16),
                   jax.ShapeDtypeStruct((2, N), jnp.float32)],
        compiler_params=pltpu.CompilerParams(
            dimension_semantics=("arbitrary",), vmem_limit_bytes=_VMEM_LIMIT),
    )(xp, w2)
    # Exact BN2d batch stats: per-channel = sum over the 16 spatial phase columns.
    s1 = jnp.sum(stats[0].reshape(16, Cp), axis=0)
    s2 = jnp.sum(stats[1].reshape(16, Cp), axis=0)
    scale, shift = _bn_scale_shift(s1, s2, float(B * 16), g, b, Cp)
    yn = _bn_relu_apply(y.reshape(Mp * 16, Cp), scale, shift)
    return yn.reshape(Mp, 4, 4, Cp)[:B]                        # (B, 4, 4, Cp) bf16


def conv_transpose_s2_bn_relu(x, w, g, b):
    """ConvTranspose2d(k=4, s=2, p=1, bias=False) + BatchNorm2d(train) + ReLU (NHWC)."""
    B, H, W, Cinp = x.shape
    Cout = w.shape[1]
    Cp = _round_up(Cout, 128)
    Wp, R = W + 2, H * (W + 2)
    L = (H + 2) * (W + 2) + 8
    wt = _tap_weights_s2(w, Cinp, Cp)
    xpf = _flatten_pad_input(x)
    mask = (jnp.arange(R) % Wp < W).astype(jnp.float32).reshape(R, 1)
    kern = functools.partial(_convt_s2_stats_kernel, H=H, W=W)
    y, stats = pl.pallas_call(
        kern,
        grid=(B,),
        in_specs=[pl.BlockSpec((1, L, Cinp), lambda i: (i, 0, 0)),
                  pl.BlockSpec((16, Cinp, Cp), lambda i: (0, 0, 0)),
                  pl.BlockSpec((R, 1), lambda i: (0, 0))],
        out_specs=[pl.BlockSpec((1, 2, 2, R, Cp), lambda i: (i, 0, 0, 0, 0)),
                   pl.BlockSpec((1, 2, Cp), lambda i: (i, 0, 0))],
        out_shape=[jax.ShapeDtypeStruct((B, 2, 2, R, Cp), jnp.bfloat16),
                   jax.ShapeDtypeStruct((B, 2, Cp), jnp.float32)],
        compiler_params=pltpu.CompilerParams(
            dimension_semantics=("parallel",), vmem_limit_bytes=_VMEM_LIMIT),
    )(xpf, wt, mask)
    # Exact BN2d batch statistics (training mode, biased variance).
    s1 = jnp.sum(stats[:, 0, :], axis=0)
    s2 = jnp.sum(stats[:, 1, :], axis=0)
    scale, shift = _bn_scale_shift(s1, s2, float(B * 4 * H * W), g, b, Cp)
    yn = _bn_relu_apply(y.reshape(B * 4 * R, Cp), scale, shift)
    yn = yn.reshape(B, 2, 2, H, Wp, Cp)[:, :, :, :, :W, :]     # drop junk columns
    return jnp.transpose(yn, (0, 3, 1, 4, 2, 5)).reshape(B, 2 * H, 2 * W, Cp)


def conv_transpose_s2_tanh(x, w):
    """Final ConvTranspose2d(k=4, s=2, p=1, bias=False) + Tanh (NHWC)."""
    B, H, W, Cinp = x.shape
    Cout = w.shape[1]
    Cp = _round_up(Cout, 128)
    Wp, R = W + 2, H * (W + 2)
    L = (H + 2) * (W + 2) + 8
    wt = _tap_weights_s2(w, Cinp, Cp)
    xpf = _flatten_pad_input(x)
    kern = functools.partial(_convt_s2_tanh_kernel, H=H, W=W)
    y = pl.pallas_call(
        kern,
        grid=(B,),
        in_specs=[pl.BlockSpec((1, L, Cinp), lambda i: (i, 0, 0)),
                  pl.BlockSpec((16, Cinp, Cp), lambda i: (0, 0, 0))],
        out_specs=pl.BlockSpec((1, 2, 2, R, Cp), lambda i: (i, 0, 0, 0, 0)),
        out_shape=jax.ShapeDtypeStruct((B, 2, 2, R, Cp), jnp.bfloat16),
        compiler_params=pltpu.CompilerParams(
            dimension_semantics=("parallel",), vmem_limit_bytes=_VMEM_LIMIT),
    )(xpf, wt)
    y = y.reshape(B, 2, 2, H, Wp, Cp)[:, :, :, :, :W, :Cout]
    return jnp.transpose(y, (0, 3, 1, 4, 2, 5)).reshape(B, 2 * H, 2 * W, Cout)


# ----------------------------------------------------------------------------
# Criss-Cross attention
# ----------------------------------------------------------------------------

def criss_cross_attention(x, p):
    # x: (B, H, W, Cp) bf16, channel-padded to a multiple of 128 (extra channels are zero).
    B, H, W, Cp = x.shape
    C, D = p['wq'].shape
    Dp = _round_up(D, 128)
    M = B * H * W
    tm, Mp = _tile_rows(M)
    x2 = _pad_rows(x.reshape(M, Cp), Mp)

    def padw(wm, rows, cols):
        return jnp.pad(wm, ((0, rows - wm.shape[0]), (0, cols - wm.shape[1])))

    w_qkv = jnp.concatenate([padw(p['wq'], Cp, Dp), padw(p['wk'], Cp, Dp),
                             padw(p['wv'], Cp, Cp)], axis=1).astype(jnp.bfloat16)
    Nw = 2 * Dp + Cp
    b_qkv = jnp.concatenate([jnp.pad(p['bq'], (0, Dp - D)),
                             jnp.pad(p['bk'], (0, Dp - D)),
                             jnp.pad(p['bv'], (0, Cp - C))]).reshape(1, Nw).astype(jnp.float32)

    q, k, v = pl.pallas_call(
        _qkv_proj_kernel,
        grid=(Mp // tm,),
        in_specs=[pl.BlockSpec((tm, Cp), lambda m: (m, 0)),
                  pl.BlockSpec((Cp, Nw), lambda m: (0, 0)),
                  pl.BlockSpec((1, Nw), lambda m: (0, 0))],
        out_specs=[pl.BlockSpec((tm, Dp), lambda m: (m, 0)),
                   pl.BlockSpec((tm, Dp), lambda m: (m, 0)),
                   pl.BlockSpec((tm, Cp), lambda m: (m, 0))],
        out_shape=[jax.ShapeDtypeStruct((Mp, Dp), jnp.bfloat16),
                   jax.ShapeDtypeStruct((Mp, Dp), jnp.bfloat16),
                   jax.ShapeDtypeStruct((Mp, Cp), jnp.bfloat16)],
        compiler_params=pltpu.CompilerParams(
            dimension_semantics=("parallel",), vmem_limit_bytes=_VMEM_LIMIT),
    )(x2, w_qkv, b_qkv)

    q = q[:M].reshape(B, H, W, Dp)
    k = k[:M].reshape(B, H, W, Dp)
    v = v[:M].reshape(B, H, W, Cp)
    gamma = p['gamma'].reshape(1).astype(jnp.float32)

    return pl.pallas_call(
        _cca_attn_kernel,
        grid=(B,),
        in_specs=[pl.BlockSpec((1, H, W, Cp), lambda i: (i, 0, 0, 0)),
                  pl.BlockSpec((1, H, W, Dp), lambda i: (i, 0, 0, 0)),
                  pl.BlockSpec((1, H, W, Dp), lambda i: (i, 0, 0, 0)),
                  pl.BlockSpec((1, H, W, Cp), lambda i: (i, 0, 0, 0)),
                  pl.BlockSpec(memory_space=pltpu.MemorySpace.SMEM)],
        out_specs=pl.BlockSpec((1, H, W, Cp), lambda i: (i, 0, 0, 0)),
        out_shape=jax.ShapeDtypeStruct((B, H, W, Cp), jnp.bfloat16),
        compiler_params=pltpu.CompilerParams(
            dimension_semantics=("parallel",), vmem_limit_bytes=_VMEM_LIMIT),
    )(x, q, k, v, gamma)


# ----------------------------------------------------------------------------
# Model: deterministic parameter init + forward
# ----------------------------------------------------------------------------

def init_params(key, isize, nz, nc, ngf):
    assert isize % 16 == 0, 'isize has to be a multiple of 16'
    cngf, tisize = ngf // 2, 4
    while tisize != isize:
        cngf *= 2
        tisize *= 2

    keys = iter(jax.random.split(key, 64))

    def convt_w(cin, cout, k=4):
        return (0.05 * jax.random.normal(next(keys), (cin, cout, k, k))).astype(jnp.float32)

    def proj_w(cin, cout):
        w = (0.05 * jax.random.normal(next(keys), (cin, cout))).astype(jnp.float32)
        b = (0.01 * jax.random.normal(next(keys), (cout,))).astype(jnp.float32)
        return w, b

    def cca_params(c):
        d = max(c // 8, 1)
        wq, bq = proj_w(c, d)
        wk, bk = proj_w(c, d)
        wv, bv = proj_w(c, c)
        return dict(kind='cca', wq=wq, bq=bq, wk=wk, bk=bk, wv=wv, bv=bv,
                    gamma=jnp.zeros((1,), jnp.float32))      # nn.Parameter(torch.zeros(1))

    layers = [dict(kind='convt_initial', w=convt_w(nz, cngf),
                   g=jnp.ones((cngf,), jnp.float32), b=jnp.zeros((cngf,), jnp.float32))]
    layers.append(cca_params(cngf))
    csize = 4
    while csize < isize // 2:
        layers.append(dict(kind='convt_bn_relu', w=convt_w(cngf, cngf // 2),
                           g=jnp.ones((cngf // 2,), jnp.float32),
                           b=jnp.zeros((cngf // 2,), jnp.float32)))
        cngf //= 2
        csize *= 2
    layers.append(cca_params(cngf))
    layers.append(dict(kind='convt_tanh', w=convt_w(cngf, nc)))
    return layers


def dcgan_g_forward(z, layers):
    # z: (B, nz, 1, 1) NCHW  ->  output: (B, nc, isize, isize) NCHW
    # TODO(synk): ngpu>1 nn.parallel.data_parallel is a device-placement detail with no
    #             Pallas equivalent; single-core forward semantics are reproduced.
    B = z.shape[0]
    x = z.reshape(B, -1).astype(jnp.bfloat16)
    for lp in layers:
        kind = lp['kind']
        if kind == 'convt_initial':
            x = conv_transpose_initial_bn_relu(x, lp['w'], lp['g'], lp['b'])
        elif kind == 'convt_bn_relu':
            x = conv_transpose_s2_bn_relu(x, lp['w'], lp['g'], lp['b'])
        elif kind == 'cca':
            x = criss_cross_attention(x, lp)
        elif kind == 'convt_tanh':
            x = conv_transpose_s2_tanh(x, lp['w'])
        else:
            raise ValueError(kind)
    return jnp.transpose(x, (0, 3, 1, 2)).astype(jnp.float32)   # NHWC -> NCHW


# ----------------------------------------------------------------------------

if __name__ == "__main__":
    isize, nz, nc, ngf, B = 16, 8, 3, 8, 2
    key = jax.random.PRNGKey(0)
    pkey, zkey = jax.random.split(key)

    layers = init_params(pkey, isize, nz, nc, ngf)
    z = jax.random.normal(zkey, (B, nz, 1, 1), dtype=jnp.float32)

    out = jax.block_until_ready(dcgan_g_forward(z, layers))

    assert out.shape == (B, nc, isize, isize), out.shape
    assert bool(jnp.all(jnp.isfinite(out))), "non-finite output"
    print("KERNEL_OK")
</pallas_src>

<mosaic_0001>
module attributes {stable_mosaic.version = 11 : i64} {
  func.func @_initial_gemm_stats_kernel(%arg0: i32, %arg1: memref<8x8xbf16, #tpu.memory_space<vmem>>, %arg2: memref<8x2048xbf16, #tpu.memory_space<vmem>>, %arg3: memref<8x2048xbf16, #tpu.memory_space<vmem>>, %arg4: memref<2x2048xf32, #tpu.memory_space<vmem>>) attributes {dimension_semantics = [#tpu.dimension_semantics<arbitrary>], iteration_bounds = array<i64: 1>, scalar_prefetch = 0 : i64, scratch_operands = 0 : i64, tpu.core_type = #tpu.core_type<tc>, window_params = [{pipeline_mode = #tpu.pipeline_mode<synchronous>, transform_indices = @transform_0, window_bounds = array<i64: 8, 8>}, {pipeline_mode = #tpu.pipeline_mode<synchronous>, transform_indices = @transform_1, window_bounds = array<i64: 8, 2048>}, {pipeline_mode = #tpu.pipeline_mode<synchronous>, transform_indices = @transform_2, window_bounds = array<i64: 8, 2048>}, {pipeline_mode = #tpu.pipeline_mode<synchronous>, transform_indices = @transform_3, window_bounds = array<i64: 2, 2048>}]} {
    %c0 = arith.constant 0 : index
    %c0_0 = arith.constant 0 : index
    %0 = vector.load %arg1[%c0, %c0_0] : memref<8x8xbf16, #tpu.memory_space<vmem>>, vector<8x8xbf16>
    %c0_1 = arith.constant 0 : index
    %c0_2 = arith.constant 0 : index
    %1 = vector.load %arg2[%c0_1, %c0_2] : memref<8x2048xbf16, #tpu.memory_space<vmem>>, vector<8x2048xbf16>
    %cst = arith.constant dense<0.000000e+00> : vector<8x2048xf32>
    %2 = tpu.matmul %0, %1, %cst {dimension_numbers = #tpu.dot_dimension_numbers<[1], [0], [0], [1], [0, 0, 1, 1], [], []>} : vector<8x8xbf16>, vector<8x2048xbf16>, vector<8x2048xf32> -> vector<8x2048xf32>
    %3 = arith.truncf %2 : vector<8x2048xf32> to vector<8x2048xbf16>
    %c0_3 = arith.constant 0 : index
    %c0_4 = arith.constant 0 : index
    %4 = vector.load %arg3[%c0_3, %c0_4] : memref<8x2048xbf16, #tpu.memory_space<vmem>>, vector<8x2048xbf16>
    tpu.vector_store %arg3[%c0_3, %c0_4], %3 {strides = array<i32>} : memref<8x2048xbf16, #tpu.memory_space<vmem>>, vector<8x2048xbf16>,
    %cst_5 = arith.constant dense<0.000000e+00> : vector<2048xf32>
    %5 = vector.multi_reduction <add>, %2, %cst_5 [0] : vector<8x2048xf32> to vector<2048xf32>
    %6 = vector.shape_cast %5 : vector<2048xf32> to vector<1x2048xf32>
    %c0_6 = arith.constant 0 : index
    %c0_7 = arith.constant 0 : index
    %7 = vector.load %arg4[%c0_6, %c0_7] : memref<2x2048xf32, #tpu.memory_space<vmem>>, vector<1x2048xf32>
    tpu.vector_store %arg4[%c0_6, %c0_7], %6 {strides = array<i32>} : memref<2x2048xf32, #tpu.memory_space<vmem>>, vector<1x2048xf32>,
    %8 = arith.mulf %2, %2 : vector<8x2048xf32>
    %cst_8 = arith.constant dense<0.000000e+00> : vector<2048xf32>
    %9 = vector.multi_reduction <add>, %8, %cst_8 [0] : vector<8x2048xf32> to vector<2048xf32>
    %10 = vector.shape_cast %9 : vector<2048xf32> to vector<1x2048xf32>
    %c1 = arith.constant 1 : index
    %c0_9 = arith.constant 0 : index
    %11 = vector.load %arg4[%c1, %c0_9] : memref<2x2048xf32, #tpu.memory_space<vmem>>, vector<1x2048xf32>
    tpu.vector_store %arg4[%c1, %c0_9], %10 {strides = array<i32>} : memref<2x2048xf32, #tpu.memory_space<vmem>>, vector<1x2048xf32>,
    return
  }
  func.func @transform_0(%arg0: i32) -> (i32, i32) {
    %c0_i32 = arith.constant 0 : i32
    %c0_i32_0 = arith.constant 0 : i32
    %c0_i32_1 = arith.constant 0 : i32
    return %c0_i32, %c0_i32_0 : i32, i32
  }
  func.func @transform_1(%arg0: i32) -> (i32, i32) {
    %c0_i32 = arith.constant 0 : i32
    %c0_i32_0 = arith.constant 0 : i32
    %c0_i32_1 = arith.constant 0 : i32
    return %c0_i32, %c0_i32_0 : i32, i32
  }
  func.func @transform_2(%arg0: i32) -> (i32, i32) {
    %c0_i32 = arith.constant 0 : i32
    %c0_i32_0 = arith.constant 0 : i32
    %c0_i32_1 = arith.constant 0 : i32
    return %c0_i32, %c0_i32_0 : i32, i32
  }
  func.func @transform_3(%arg0: i32) -> (i32, i32) {
    %c0_i32 = arith.constant 0 : i32
    %c0_i32_0 = arith.constant 0 : i32
    %c0_i32_1 = arith.constant 0 : i32
    return %c0_i32, %c0_i32_0 : i32, i32
  }
}

</mosaic_0001>

<llo_original>
// kernel: tpu_custom_call.1
$region0: #{tpu_custom_call.1}
  #allocation0 [shape = 'u32[]', space=smem, size = 0x4, offset = 0x4, fixed_abs, tag = 'smem constant byte address 0x4 - core index']
  #allocation1 [shape = 'u32[72,128]{1,0:T(1,128)}', space=vmem, size = 0x9000, scoped, tag = 'internal scratch']
  %s0 = inlined_call_operand.hbm [shape: bf16[8,8], index: 0, kind: input, shape index: {}]
  %s1 = inlined_call_operand.hbm [shape: bf16[8,2048], index: 1, kind: input, shape index: {}]
  %s2 = inlined_call_operand.hbm [shape: bf16[8,2048], index: 2, kind: output, shape index: {0}]
  %s3 = inlined_call_operand.hbm [shape: f32[2,2048], index: 3, kind: output, shape index: {1}]
  %4 = xla_tuple %s2, %s3
  %s5 = sld [smem:[#allocation0]]
  $region34: #{tpu_custom_call.1} parent=0
    _
  %s7 = ssub.s32 1, %s5
  %s8 = scalar_select 0, %s7, %s5
  $region1: #{tpu_custom_call.1} parent=0
    #allocation2 [shape = 'u8[2048]{0}', space=vmem, size = 0x800, scoped, tag = 'input window, operand 0, single buffered']
    #allocation3 [shape = 's32[1]{0}', space=sflag, size = 0x4, scoped, tag = 'scoped memory for tpu_custom_call.1']
    #allocation4 [shape = 's32[1]{0}', space=sflag, size = 0x4, scoped, tag = 'scoped memory for tpu_custom_call.1']
    #allocation5 [shape = 'u8[32768]{0}', space=vmem, size = 0x8000, scoped, tag = 'input window, operand 1, single buffered']
    #allocation6 [shape = 's32[1]{0}', space=sflag, size = 0x4, scoped, tag = 'scoped memory for tpu_custom_call.1']
    #allocation7 [shape = 'u8[32768]{0}', space=vmem, size = 0x8000, scoped, tag = 'output window, operand 0, single buffered']
    #allocation8 [shape = 'u8[16384]{0}', space=vmem, size = 0x4000, scoped, tag = 'output window, operand 1, single buffered']
    #allocation9 [shape = 's32[1]{0}', space=sflag, size = 0x4, scoped, tag = 'scoped memory for tpu_custom_call.1']
    %9 = vsyncpa [#allocation3], 0
    %10 = vsyncpa [#allocation6], 0
    %11 = vsyncpa [#allocation4], 0
    %12 = vsyncpa [#allocation9], 0
    // Predicated region
    $region2: #{tpu_custom_call.1} parent=1 // pred_check
      _
    $region3: #{tpu_custom_call.1} parent=1 // pred_check_branch
      %14 = sbr.rel (0) target = $region5
    $region4: #{tpu_custom_call.1} parent=1 // pred_region
      %16 = vsyncadd [#allocation3], 0
      %s18 = sshll.u32 %s0, 4
      %s19 = int_to_ptr.hbm [resolvable:$true] %s18
      %s20 = sshll.u32 [#allocation2], 4
      %s21 = int_to_ptr.vmem [resolvable:$true] %s20
      %23 = dma.hbm_to_vmem [thread:$0]  %s19, 64, %s21, [#allocation3]
    $region5: #{tpu_custom_call.1} parent=1 // pred_fallthru
      _
    // Predicated region
    $region6: #{tpu_custom_call.1} parent=1 // pred_check
      _
    $region7: #{tpu_custom_call.1} parent=1 // pred_check_branch
      %25 = sbr.rel (0) target = $region9
    $region8: #{tpu_custom_call.1} parent=1 // pred_region
      %27 = vsyncadd [#allocation6], 0
      %s29 = sshll.u32 %s1, 4
      %s30 = int_to_ptr.hbm [resolvable:$true] %s29
      %s31 = sshll.u32 [#allocation5], 4
      %s32 = int_to_ptr.vmem [resolvable:$true] %s31
      %34 = dma.hbm_to_vmem [thread:$0]  %s30, 1024, %s32, [#allocation6]
    $region9: #{tpu_custom_call.1} parent=1 // pred_fallthru
      _
    // Predicated region
    $region10: #{tpu_custom_call.1} parent=1 // pred_check
      _
    $region11: #{tpu_custom_call.1} parent=1 // pred_check_branch
      %36 = sbr.rel (0) target = $region13
    $region12: #{tpu_custom_call.1} parent=1 // pred_region
      %38 = dma.done [#allocation3], 64
    $region13: #{tpu_custom_call.1} parent=1 // pred_fallthru
      _
    // Predicated region
    $region14: #{tpu_custom_call.1} parent=1 // pred_check
      _
    $region15: #{tpu_custom_call.1} parent=1 // pred_check_branch
      %40 = sbr.rel (0) target = $region17
    $region16: #{tpu_custom_call.1} parent=1 // pred_region
      %42 = dma.done [#allocation6], 1024
    $region17: #{tpu_custom_call.1} parent=1 // pred_fallthru
      _
    %v44 = vld [vmem:[#allocation2] sm:$0xf]
    %v45 = vld [vmem:[#allocation5] sm:$0xff]
    %v46 = vld [vmem:[#allocation5 + $0x8] sm:$0xff]
    %v47 = vld [vmem:[#allocation5 + $0x10] sm:$0xff]
    %v48 = vld [vmem:[#allocation5 + $0x18] sm:$0xff]
    %v49 = vld [vmem:[#allocation5 + $0x20] sm:$0xff]
    %v50 = vld [vmem:[#allocation5 + $0x28] sm:$0xff]
    %v51 = vld [vmem:[#allocation5 + $0x30] sm:$0xff]
    %v52 = vld [vmem:[#allocation5 + $0x38] sm:$0xff]
    %v61 = vunpack.c.l.b16 %v45
    %v62 = vunpack.c.h.b16 %v45
    %v63 = vunpack.c.l.b16 %v46
    %v64 = vunpack.c.h.b16 %v46
    %v65 = vunpack.c.l.b16 %v47
    %v66 = vunpack.c.h.b16 %v47
    %v67 = vunpack.c.l.b16 %v48
    %v68 = vunpack.c.h.b16 %v48
    %v69 = vunpack.c.l.b16 %v49
    %v70 = vunpack.c.h.b16 %v49
    %v71 = vunpack.c.l.b16 %v50
    %v72 = vunpack.c.h.b16 %v50
    %v73 = vunpack.c.l.b16 %v51
    %v74 = vunpack.c.h.b16 %v51
    %v75 = vunpack.c.l.b16 %v52
    %v76 = vunpack.c.h.b16 %v52
    %v77 = vpack.c.b16 %v61, %v61
    %v78 = vpack.c.b16 %v62, %v62
    %v79 = vpack.c.b16 %v63, %v63
    %v80 = vpack.c.b16 %v64, %v64
    %v81 = vpack.c.b16 %v65, %v65
    %v82 = vpack.c.b16 %v66, %v66
    %v83 = vpack.c.b16 %v67, %v67
    %v84 = vpack.c.b16 %v68, %v68
    %v85 = vpack.c.b16 %v69, %v69
    %v86 = vpack.c.b16 %v70, %v70
    %v87 = vpack.c.b16 %v71, %v71
    %v88 = vpack.c.b16 %v72, %v72
    %v89 = vpack.c.b16 %v73, %v73
    %v90 = vpack.c.b16 %v74, %v74
    %v91 = vpack.c.b16 %v75, %v75
    %v92 = vpack.c.b16 %v76, %v76
    %vm93 = vcmask 64512
    %v95 = vsel %vm93, %v44, 0
    %vm97 = vcmask 1043456
    %v99 = vsel %vm97, %v77, 0
    %v102 = vsel %vm97, %v78, 0
    %v105 = vsel %vm97, %v79, 0
    %v108 = vsel %vm97, %v80, 0
    %v111 = vsel %vm97, %v81, 0
    %v114 = vsel %vm97, %v82, 0
    %v117 = vsel %vm97, %v83, 0
    %v120 = vsel %vm97, %v84, 0
    %v123 = vsel %vm97, %v85, 0
    %v126 = vsel %vm97, %v86, 0
    %v129 = vsel %vm97, %v87, 0
    %v132 = vsel %vm97, %v88, 0
    %v135 = vsel %vm97, %v89, 0
    %v138 = vsel %vm97, %v90, 0
    %v141 = vsel %vm97, %v91, 0
    %v144 = vsel %vm97, %v92, 0
    %146 = vmatpush.bf16.msra.mxu0 0
    %147 = vmatpush.bf16.msra.mxu0 0
    %148 = vmatpush.bf16.msra.mxu0 0
    %149 = vmatpush.bf16.msra.mxu0 0
    %150 = vmatpush.bf16.msra.mxu0 0
    %151 = vmatpush.bf16.msra.mxu0 0
    %152 = vmatpush.bf16.msra.mxu0 0
    %153 = vmatpush.bf16.msra.mxu0 %v99
    %154 = vmatmul.bf16.gmra.mxu0 %v95
    %v155 = vpop.f32.mrf.mxu0
    %v156 = vadd.f32 0.0, %v155
    %v157 = vpop.f32.mrf.mxu0
    %158 = vdwg.mxu0
    %159 = vmatpush.bf16.msra.mxu0 0
    %160 = vmatpush.bf16.msra.mxu0 0
    %161 = vmatpush.bf16.msra.mxu0 0
    %162 = vmatpush.bf16.msra.mxu0 0
    %163 = vmatpush.bf16.msra.mxu0 0
    %164 = vmatpush.bf16.msra.mxu0 0
    %165 = vmatpush.bf16.msra.mxu0 0
    %166 = vmatpush.bf16.msra.mxu0 %v102
    %167 = vmatmul.bf16.gmra.mxu0 %v95
    %v168 = vpop.f32.mrf.mxu0
    %v169 = vadd.f32 0.0, %v168
    %v170 = vpop.f32.mrf.mxu0
    %171 = vdwg.mxu0
    %172 = vmatpush.bf16.msra.mxu0 0
    %173 = vmatpush.bf16.msra.mxu0 0
    %174 = vmatpush.bf16.msra.mxu0 0
    %175 = vmatpush.bf16.msra.mxu0 0
    %176 = vmatpush.bf16.msra.mxu0 0
    %177 = vmatpush.bf16.msra.mxu0 0
    %178 = vmatpush.bf16.msra.mxu0 0
    %179 = vmatpush.bf16.msra.mxu0 %v105
    %180 = vmatmul.bf16.gmra.mxu0 %v95
    %v181 = vpop.f32.mrf.mxu0
    %v182 = vadd.f32 0.0, %v181
    %v183 = vpop.f32.mrf.mxu0
    %184 = vdwg.mxu0
    %185 = vmatpush.bf16.msra.mxu0 0
    %186 = vmatpush.bf16.msra.mxu0 0
    %187 = vmatpush.bf16.msra.mxu0 0
    %188 = vmatpush.bf16.msra.mxu0 0
    %189 = vmatpush.bf16.msra.mxu0 0
    %190 = vmatpush.bf16.msra.mxu0 0
    %191 = vmatpush.bf16.msra.mxu0 0
    %192 = vmatpush.bf16.msra.mxu0 %v108
    %193 = vmatmul.bf16.gmra.mxu0 %v95
    %v194 = vpop.f32.mrf.mxu0
    %v195 = vadd.f32 0.0, %v194
    %v196 = vpop.f32.mrf.mxu0
    %197 = vdwg.mxu0
    %198 = vmatpush.bf16.msra.mxu0 0
    %199 = vmatpush.bf16.msra.mxu0 0
    %200 = vmatpush.bf16.msra.mxu0 0
    %201 = vmatpush.bf16.msra.mxu0 0
    %202 = vmatpush.bf16.msra.mxu0 0
    %203 = vmatpush.bf16.msra.mxu0 0
    %204 = vmatpush.bf16.msra.mxu0 0
    %205 = vmatpush.bf16.msra.mxu0 %v111
    %206 = vmatmul.bf16.gmra.mxu0 %v95
    %v207 = vpop.f32.mrf.mxu0
    %v208 = vadd.f32 0.0, %v207
    %v209 = vpop.f32.mrf.mxu0
    %210 = vdwg.mxu0
    %211 = vmatpush.bf16.msra.mxu0 0
    %212 = vmatpush.bf16.msra.mxu0 0
    %213 = vmatpush.bf16.msra.mxu0 0
    %214 = vmatpush.bf16.msra.mxu0 0
    %215 = vmatpush.bf16.msra.mxu0 0
    %216 = vmatpush.bf16.msra.mxu0 0
    %217 = vmatpush.bf16.msra.mxu0 0
    %218 = vmatpush.bf16.msra.mxu0 %v114
    %219 = vmatmul.bf16.gmra.mxu0 %v95
    %v220 = vpop.f32.mrf.mxu0
    %v221 = vadd.f32 0.0, %v220
    %v222 = vpop.f32.mrf.mxu0
    %223 = vdwg.mxu0
    %224 = vmatpush.bf16.msra.mxu0 0
    %225 = vmatpush.bf16.msra.mxu0 0
    %226 = vmatpush.bf16.msra.mxu0 0
    %227 = vmatpush.bf16.msra.mxu0 0
    %228 = vmatpush.bf16.msra.mxu0 0
    %229 = vmatpush.bf16.msra.mxu0 0
    %230 = vmatpush.bf16.msra.mxu0 0
    %231 = vmatpush.bf16.msra.mxu0 %v117
    %232 = vmatmul.bf16.gmra.mxu0 %v95
    %v233 = vpop.f32.mrf.mxu0
    %v234 = vadd.f32 0.0, %v233
    %v235 = vpop.f32.mrf.mxu0
    %236 = vdwg.mxu0
    %237 = vmatpush.bf16.msra.mxu0 0
    %238 = vmatpush.bf16.msra.mxu0 0
    %239 = vmatpush.bf16.msra.mxu0 0
    %240 = vmatpush.bf16.msra.mxu0 0
    %241 = vmatpush.bf16.msra.mxu0 0
    %242 = vmatpush.bf16.msra.mxu0 0
    %243 = vmatpush.bf16.msra.mxu0 0
    %244 = vmatpush.bf16.msra.mxu0 %v120
    %245 = vmatmul.bf16.gmra.mxu0 %v95
    %v246 = vpop.f32.mrf.mxu0
    %v247 = vadd.f32 0.0, %v246
    %v248 = vpop.f32.mrf.mxu0
    %249 = vdwg.mxu0
    %250 = vmatpush.bf16.msra.mxu0 0
    %251 = vmatpush.bf16.msra.mxu0 0
    %252 = vmatpush.bf16.msra.mxu0 0
    %253 = vmatpush.bf16.msra.mxu0 0
    %254 = vmatpush.bf16.msra.mxu0 0
    %255 = vmatpush.bf16.msra.mxu0 0
    %256 = vmatpush.bf16.msra.mxu0 0
    %257 = vmatpush.bf16.msra.mxu0 %v123
    %258 = vmatmul.bf16.gmra.mxu0 %v95
    %v259 = vpop.f32.mrf.mxu0
    %v260 = vadd.f32 0.0, %v259
    %v261 = vpop.f32.mrf.mxu0
    %262 = vdwg.mxu0
    %263 = vmatpush.bf16.msra.mxu0 0
    %264 = vmatpush.bf16.msra.mxu0 0
    %265 = vmatpush.bf16.msra.mxu0 0
    %266 = vmatpush.bf16.msra.mxu0 0
    %267 = vmatpush.bf16.msra.mxu0 0
    %268 = vmatpush.bf16.msra.mxu0 0
    %269 = vmatpush.bf16.msra.mxu0 0
    %270 = vmatpush.bf16.msra.mxu0 %v126
    %271 = vmatmul.bf16.gmra.mxu0 %v95
    %v272 = vpop.f32.mrf.mxu0
    %v273 = vadd.f32 0.0, %v272
    %v274 = vpop.f32.mrf.mxu0
    %275 = vdwg.mxu0
    %276 = vmatpush.bf16.msra.mxu0 0
    %277 = vmatpush.bf16.msra.mxu0 0
    %278 = vmatpush.bf16.msra.mxu0 0
    %279 = vmatpush.bf16.msra.mxu0 0
    %280 = vmatpush.bf16.msra.mxu0 0
    %281 = vmatpush.bf16.msra.mxu0 0
    %282 = vmatpush.bf16.msra.mxu0 0
    %283 = vmatpush.bf16.msra.mxu0 %v129
    %284 = vmatmul.bf16.gmra.mxu0 %v95
    %v285 = vpop.f32.mrf.mxu0
    %v286 = vadd.f32 0.0, %v285
    %v287 = vpop.f32.mrf.mxu0
    %288 = vdwg.mxu0
    %289 = vmatpush.bf16.msra.mxu0 0
    %290 = vmatpush.bf16.msra.mxu0 0
    %291 = vmatpush.bf16.msra.mxu0 0
    %292 = vmatpush.bf16.msra.mxu0 0
    %293 = vmatpush.bf16.msra.mxu0 0
    %294 = vmatpush.bf16.msra.mxu0 0
    %295 = vmatpush.bf16.msra.mxu0 0
    %296 = vmatpush.bf16.msra.mxu0 %v132
    %297 = vmatmul.bf16.gmra.mxu0 %v95
    %v298 = vpop.f32.mrf.mxu0
    %v299 = vadd.f32 0.0, %v298
    %v300 = vpop.f32.mrf.mxu0
    %301 = vdwg.mxu0
    %302 = vmatpush.bf16.msra.mxu0 0
    %303 = vmatpush.bf16.msra.mxu0 0
    %304 = vmatpush.bf16.msra.mxu0 0
    %305 = vmatpush.bf16.msra.mxu0 0
    %306 = vmatpush.bf16.msra.mxu0 0
    %307 = vmatpush.bf16.msra.mxu0 0
    %308 = vmatpush.bf16.msra.mxu0 0
    %309 = vmatpush.bf16.msra.mxu0 %v135
    %310 = vmatmul.bf16.gmra.mxu0 %v95
    %v311 = vpop.f32.mrf.mxu0
    %v312 = vadd.f32 0.0, %v311
    %v313 = vpop.f32.mrf.mxu0
    %314 = vdwg.mxu0
    %315 = vmatpush.bf16.msra.mxu0 0
    %316 = vmatpush.bf16.msra.mxu0 0
    %317 = vmatpush.bf16.msra.mxu0 0
    %318 = vmatpush.bf16.msra.mxu0 0
    %319 = vmatpush.bf16.msra.mxu0 0
    %320 = vmatpush.bf16.msra.mxu0 0
    %321 = vmatpush.bf16.msra.mxu0 0
    %322 = vmatpush.bf16.msra.mxu0 %v138
    %323 = vmatmul.bf16.gmra.mxu0 %v95
    %v324 = vpop.f32.mrf.mxu0
    %v325 = vadd.f32 0.0, %v324
    %v326 = vpop.f32.mrf.mxu0
    %327 = vdwg.mxu0
    %328 = vmatpush.bf16.msra.mxu0 0
    %329 = vmatpush.bf16.msra.mxu0 0
    %330 = vmatpush.bf16.msra.mxu0 0
    %331 = vmatpush.bf16.msra.mxu0 0
    %332 = vmatpush.bf16.msra.mxu0 0
    %333 = vmatpush.bf16.msra.mxu0 0
    %334 = vmatpush.bf16.msra.mxu0 0
    %335 = vmatpush.bf16.msra.mxu0 %v141
    %336 = vmatmul.bf16.gmra.mxu0 %v95
    %v337 = vpop.f32.mrf.mxu0
    %v338 = vadd.f32 0.0, %v337
    %v339 = vpop.f32.mrf.mxu0
    %340 = vdwg.mxu0
    %341 = vmatpush.bf16.msra.mxu0 0
    %342 = vmatpush.bf16.msra.mxu0 0
    %343 = vmatpush.bf16.msra.mxu0 0
    %344 = vmatpush.bf16.msra.mxu0 0
    %345 = vmatpush.bf16.msra.mxu0 0
    %346 = vmatpush.bf16.msra.mxu0 0
    %347 = vmatpush.bf16.msra.mxu0 0
    %348 = vmatpush.bf16.msra.mxu0 %v144
    %349 = vmatmul.bf16.gmra.mxu0 %v95
    %v350 = vpop.f32.mrf.mxu0
    %v351 = vadd.f32 0.0, %v350
    %v352 = vpop.f32.mrf.mxu0
    %353 = vdwg.mxu0
    %v354 = vpack.c.bf16 %v169, %v156
    %v355 = vpack.c.bf16 %v195, %v182
    %v356 = vpack.c.bf16 %v221, %v208
    %v357 = vpack.c.bf16 %v247, %v234
    %v358 = vpack.c.bf16 %v273, %v260
    %v359 = vpack.c.bf16 %v299, %v286
    %v360 = vpack.c.bf16 %v325, %v312
    %v361 = vpack.c.bf16 %v351, %v338
    %362 = vst [vmem:[#allocation7] sm:$0xff] %v354
    %363 = vst [vmem:[#allocation7 + $0x8] sm:$0xff] %v355
    %364 = vst [vmem:[#allocation7 + $0x10] sm:$0xff] %v356
    %365 = vst [vmem:[#allocation7 + $0x18] sm:$0xff] %v357
    %366 = vst [vmem:[#allocation7 + $0x20] sm:$0xff] %v358
    %367 = vst [vmem:[#allocation7 + $0x28] sm:$0xff] %v359
    %368 = vst [vmem:[#allocation7 + $0x30] sm:$0xff] %v360
    %369 = vst [vmem:[#allocation7 + $0x38] sm:$0xff] %v361
    %v370 = vrot.slane %v156, 4
    %v371 = vadd.f32 %v156, %v370
    %v372 = vrot.slane %v371, 2
    %v373 = vadd.f32 %v371, %v372
    %v374 = vrot.slane %v373, 1
    %v375 = vadd.f32 %v373, %v374
    %v376 = vrot.slane %v169, 4
    %v377 = vadd.f32 %v169, %v376
    %v378 = vrot.slane %v377, 2
    %v379 = vadd.f32 %v377, %v378
    %v380 = vrot.slane %v379, 1
    %v381 = vadd.f32 %v379, %v380
    %v382 = vrot.slane %v182, 4
    %v383 = vadd.f32 %v182, %v382
    %v384 = vrot.slane %v383, 2
    %v385 = vadd.f32 %v383, %v384
    %v386 = vrot.slane %v385, 1
    %v387 = vadd.f32 %v385, %v386
    %v388 = vrot.slane %v195, 4
    %v389 = vadd.f32 %v195, %v388
    %v390 = vrot.slane %v389, 2
    %v391 = vadd.f32 %v389, %v390
    %v392 = vrot.slane %v391, 1
    %v393 = vadd.f32 %v391, %v392
    %v394 = vrot.slane %v208, 4
    %v395 = vadd.f32 %v208, %v394
    %v396 = vrot.slane %v395, 2
    %v397 = vadd.f32 %v395, %v396
    %v398 = vrot.slane %v397, 1
    %v399 = vadd.f32 %v397, %v398
    %v400 = vrot.slane %v221, 4
    %v401 = vadd.f32 %v221, %v400
    %v402 = vrot.slane %v401, 2
    %v403 = vadd.f32 %v401, %v402
    %v404 = vrot.slane %v403, 1
    %v405 = vadd.f32 %v403, %v404
    %v406 = vrot.slane %v234, 4
    %v407 = vadd.f32 %v234, %v406
    %v408 = vrot.slane %v407, 2
    %v409 = vadd.f32 %v407, %v408
    %v410 = vrot.slane %v409, 1
    %v411 = vadd.f32 %v409, %v410
    %v412 = vrot.slane %v247, 4
    %v413 = vadd.f32 %v247, %v412
    %v414 = vrot.slane %v413, 2
    %v415 = vadd.f32 %v413, %v414
    %v416 = vrot.slane %v415, 1
    %v417 = vadd.f32 %v415, %v416
    %v418 = vrot.slane %v260, 4
    %v419 = vadd.f32 %v260, %v418
    %v420 = vrot.slane %v419, 2
    %v421 = vadd.f32 %v419, %v420
    %v422 = vrot.slane %v421, 1
    %v423 = vadd.f32 %v421, %v422
    %v424 = vrot.slane %v273, 4
    %v425 = vadd.f32 %v273, %v424
    %v426 = vrot.slane %v425, 2
    %v427 = vadd.f32 %v425, %v426
    %v428 = vrot.slane %v427, 1
    %v429 = vadd.f32 %v427, %v428
    %v430 = vrot.slane %v286, 4
    %v431 = vadd.f32 %v286, %v430
    %v432 = vrot.slane %v431, 2
    %v433 = vadd.f32 %v431, %v432
    %v434 = vrot.slane %v433, 1
    %v435 = vadd.f32 %v433, %v434
    %v436 = vrot.slane %v299, 4
    %v437 = vadd.f32 %v299, %v436
    %v438 = vrot.slane %v437, 2
    %v439 = vadd.f32 %v437, %v438
    %v440 = vrot.slane %v439, 1
    %v441 = vadd.f32 %v439, %v440
    %v442 = vrot.slane %v312, 4
    %v443 = vadd.f32 %v312, %v442
    %v444 = vrot.slane %v443, 2
    %v445 = vadd.f32 %v443, %v444
    %v446 = vrot.slane %v445, 1
    %v447 = vadd.f32 %v445, %v446
    %v448 = vrot.slane %v325, 4
    %v449 = vadd.f32 %v325, %v448
    %v450 = vrot.slane %v449, 2
    %v451 = vadd.f32 %v449, %v450
    %v452 = vrot.slane %v451, 1
    %v453 = vadd.f32 %v451, %v452
    %v454 = vrot.slane %v338, 4
    %v455 = vadd.f32 %v338, %v454
    %v456 = vrot.slane %v455, 2
    %v457 = vadd.f32 %v455, %v456
    %v458 = vrot.slane %v457, 1
    %v459 = vadd.f32 %v457, %v458
    %v460 = vrot.slane %v351, 4
    %v461 = vadd.f32 %v351, %v460
    %v462 = vrot.slane %v461, 2
    %v463 = vadd.f32 %v461, %v462
    %v464 = vrot.slane %v463, 1
    %v465 = vadd.f32 %v463, %v464
    %v482 = vrot.slane %v381, 7
    %v483 = vrot.slane %v387, 6
    %v484 = vrot.slane %v393, 5
    %v485 = vrot.slane %v399, 4
    %v486 = vrot.slane %v405, 3
    %v487 = vrot.slane %v411, 2
    %v488 = vrot.slane %v417, 1
    %v489 = vrot.slane %v429, 7
    %v490 = vrot.slane %v435, 6
    %v491 = vrot.slane %v441, 5
    %v492 = vrot.slane %v447, 4
    %v493 = vrot.slane %v453, 3
    %v494 = vrot.slane %v459, 2
    %v495 = vrot.slane %v465, 1
    %vm496 = vcmask 1040384
    %v497 = vsel %vm496, %v375, %v482
    %vm498 = vcmask 1042434
    %v499 = vsel %vm498, %v483, %v484
    %vm500 = vcmask 1041408
    %v501 = vsel %vm500, %v497, %v499
    %vm502 = vcmask 1044484
    %v503 = vsel %vm502, %v485, %v486
    %vm504 = vcmask 1046534
    %v505 = vsel %vm504, %v487, %v488
    %vm506 = vcmask 1045508
    %v507 = vsel %vm506, %v503, %v505
    %v508 = vsel %vm97, %v501, %v507
    %v509 = vsel %vm496, %v423, %v489
    %v510 = vsel %vm498, %v490, %v491
    %v511 = vsel %vm500, %v509, %v510
    %v512 = vsel %vm502, %v492, %v493
    %v513 = vsel %vm504, %v494, %v495
    %v514 = vsel %vm506, %v512, %v513
    %v515 = vsel %vm97, %v511, %v514
    %518 = vst [vmem:[#allocation8] ss:$2 sm:$0xff] %v508
    %s519 = scalar_lea.vmem [#allocation8], 16
    %520 = vst [vmem:[%s519] ss:$2 sm:$0xff] %v515
    %v521 = vmul.f32 %v156, %v156
    %v522 = vmul.f32 %v169, %v169
    %v523 = vmul.f32 %v182, %v182
    %v524 = vmul.f32 %v195, %v195
    %v525 = vmul.f32 %v208, %v208
    %v526 = vmul.f32 %v221, %v221
    %v527 = vmul.f32 %v234, %v234
    %v528 = vmul.f32 %v247, %v247
    %v529 = vmul.f32 %v260, %v260
    %v530 = vmul.f32 %v273, %v273
    %v531 = vmul.f32 %v286, %v286
    %v532 = vmul.f32 %v299, %v299
    %v533 = vmul.f32 %v312, %v312
    %v534 = vmul.f32 %v325, %v325
    %v535 = vmul.f32 %v338, %v338
    %v536 = vmul.f32 %v351, %v351
    %v537 = vrot.slane %v521, 4
    %v538 = vadd.f32 %v521, %v537
    %v539 = vrot.slane %v538, 2
    %v540 = vadd.f32 %v538, %v539
    %v541 = vrot.slane %v540, 1
    %v542 = vadd.f32 %v540, %v541
    %v543 = vrot.slane %v522, 4
    %v544 = vadd.f32 %v522, %v543
    %v545 = vrot.slane %v544, 2
    %v546 = vadd.f32 %v544, %v545
    %v547 = vrot.slane %v546, 1
    %v548 = vadd.f32 %v546, %v547
    %v549 = vrot.slane %v523, 4
    %v550 = vadd.f32 %v523, %v549
    %v551 = vrot.slane %v550, 2
    %v552 = vadd.f32 %v550, %v551
    %v553 = vrot.slane %v552, 1
    %v554 = vadd.f32 %v552, %v553
    %v555 = vrot.slane %v524, 4
    %v556 = vadd.f32 %v524, %v555
    %v557 = vrot.slane %v556, 2
    %v558 = vadd.f32 %v556, %v557
    %v559 = vrot.slane %v558, 1
    %v560 = vadd.f32 %v558, %v559
    %v561 = vrot.slane %v525, 4
    %v562 = vadd.f32 %v525, %v561
    %v563 = vrot.slane %v562, 2
    %v564 = vadd.f32 %v562, %v563
    %v565 = vrot.slane %v564, 1
    %v566 = vadd.f32 %v564, %v565
    %v567 = vrot.slane %v526, 4
    %v568 = vadd.f32 %v526, %v567
    %v569 = vrot.slane %v568, 2
    %v570 = vadd.f32 %v568, %v569
    %v571 = vrot.slane %v570, 1
    %v572 = vadd.f32 %v570, %v571
    %v573 = vrot.slane %v527, 4
    %v574 = vadd.f32 %v527, %v573
    %v575 = vrot.slane %v574, 2
    %v576 = vadd.f32 %v574, %v575
    %v577 = vrot.slane %v576, 1
    %v578 = vadd.f32 %v576, %v577
    %v579 = vrot.slane %v528, 4
    %v580 = vadd.f32 %v528, %v579
    %v581 = vrot.slane %v580, 2
    %v582 = vadd.f32 %v580, %v581
    %v583 = vrot.slane %v582, 1
    %v584 = vadd.f32 %v582, %v583
    %v585 = vrot.slane %v529, 4
    %v586 = vadd.f32 %v529, %v585
    %v587 = vrot.slane %v586, 2
    %v588 = vadd.f32 %v586, %v587
    %v589 = vrot.slane %v588, 1
    %v590 = vadd.f32 %v588, %v589
    %v591 = vrot.slane %v530, 4
    %v592 = vadd.f32 %v530, %v591
    %v593 = vrot.slane %v592, 2
    %v594 = vadd.f32 %v592, %v593
    %v595 = vrot.slane %v594, 1
    %v596 = vadd.f32 %v594, %v595
    %v597 = vrot.slane %v531, 4
    %v598 = vadd.f32 %v531, %v597
    %v599 = vrot.slane %v598, 2
    %v600 = vadd.f32 %v598, %v599
    %v601 = vrot.slane %v600, 1
    %v602 = vadd.f32 %v600, %v601
    %v603 = vrot.slane %v532, 4
    %v604 = vadd.f32 %v532, %v603
    %v605 = vrot.slane %v604, 2
    %v606 = vadd.f32 %v604, %v605
    %v607 = vrot.slane %v606, 1
    %v608 = vadd.f32 %v606, %v607
    %v609 = vrot.slane %v533, 4
    %v610 = vadd.f32 %v533, %v609
    %v611 = vrot.slane %v610, 2
    %v612 = vadd.f32 %v610, %v611
    %v613 = vrot.slane %v612, 1
    %v614 = vadd.f32 %v612, %v613
    %v615 = vrot.slane %v534, 4
    %v616 = vadd.f32 %v534, %v615
    %v617 = vrot.slane %v616, 2
    %v618 = vadd.f32 %v616, %v617
    %v619 = vrot.slane %v618, 1
    %v620 = vadd.f32 %v618, %v619
    %v621 = vrot.slane %v535, 4
    %v622 = vadd.f32 %v535, %v621
    %v623 = vrot.slane %v622, 2
    %v624 = vadd.f32 %v622, %v623
    %v625 = vrot.slane %v624, 1
    %v626 = vadd.f32 %v624, %v625
    %v627 = vrot.slane %v536, 4
    %v628 = vadd.f32 %v536, %v627
    %v629 = vrot.slane %v628, 2
    %v630 = vadd.f32 %v628, %v629
    %v631 = vrot.slane %v630, 1
    %v632 = vadd.f32 %v630, %v631
    %v649 = vrot.slane %v548, 7
    %v650 = vrot.slane %v554, 6
    %v651 = vrot.slane %v560, 5
    %v652 = vrot.slane %v566, 4
    %v653 = vrot.slane %v572, 3
    %v654 = vrot.slane %v578, 2
    %v655 = vrot.slane %v584, 1
    %v656 = vrot.slane %v596, 7
    %v657 = vrot.slane %v602, 6
    %v658 = vrot.slane %v608, 5
    %v659 = vrot.slane %v614, 4
    %v660 = vrot.slane %v620, 3
    %v661 = vrot.slane %v626, 2
    %v662 = vrot.slane %v632, 1
    %v663 = vsel %vm496, %v542, %v649
    %v664 = vsel %vm498, %v650, %v651
    %v665 = vsel %vm500, %v663, %v664
    %v666 = vsel %vm502, %v652, %v653
    %v667 = vsel %vm504, %v654, %v655
    %v668 = vsel %vm506, %v666, %v667
    %v669 = vsel %vm97, %v665, %v668
    %v670 = vsel %vm496, %v590, %v656
    %v671 = vsel %vm498, %v657, %v658
    %v672 = vsel %vm500, %v670, %v671
    %v673 = vsel %vm502, %v659, %v660
    %v674 = vsel %vm504, %v661, %v662
    %v675 = vsel %vm506, %v673, %v674
    %v676 = vsel %vm97, %v672, %v675
    %s679 = scalar_lea.vmem [#allocation8], 1
    %680 = vst [vmem:[%s679] ss:$2 sm:$0xff] %v669
    %s681 = scalar_lea.vmem [#allocation8], 17
    %682 = vst [vmem:[%s681] ss:$2 sm:$0xff] %v676
    // Predicated region
    $region18: #{tpu_custom_call.1} parent=1 // pred_check
      _
    $region19: #{tpu_custom_call.1} parent=1 // pred_check_branch
      %684 = sbr.rel (0) target = $region21
    $region20: #{tpu_custom_call.1} parent=1 // pred_region
      %686 = vsyncadd [#allocation4], 0
      %s688 = sshll.u32 [#allocation7], 4
      %s689 = int_to_ptr.vmem [resolvable:$true] %s688
      %s690 = sshll.u32 %s2, 4
      %s691 = int_to_ptr.hbm [resolvable:$true] %s690
      %693 = dma.vmem_to_hbm [thread:$0]  %s689, 1024, %s691, [#allocation4]
    $region21: #{tpu_custom_call.1} parent=1 // pred_fallthru
      _
    // Predicated region
    $region22: #{tpu_custom_call.1} parent=1 // pred_check
      _
    $region23: #{tpu_custom_call.1} parent=1 // pred_check_branch
      %695 = sbr.rel (0) target = $region25
    $region24: #{tpu_custom_call.1} parent=1 // pred_region
      %697 = vsyncadd [#allocation9], 0
      %s699 = sshll.u32 [#allocation8], 4
      %s700 = int_to_ptr.vmem [resolvable:$true] %s699
      %s701 = sshll.u32 %s3, 4
      %s702 = int_to_ptr.hbm [resolvable:$true] %s701
      %704 = dma.vmem_to_hbm [thread:$0]  %s700, 512, %s702, [#allocation9]
    $region25: #{tpu_custom_call.1} parent=1 // pred_fallthru
      _
    // Predicated region
    $region26: #{tpu_custom_call.1} parent=1 // pred_check
      _
    $region27: #{tpu_custom_call.1} parent=1 // pred_check_branch
      %706 = sbr.rel (0) target = $region29
    $region28: #{tpu_custom_call.1} parent=1 // pred_region
      %708 = dma.done [#allocation4], 1024
    $region29: #{tpu_custom_call.1} parent=1 // pred_fallthru
      _
    // Predicated region
    $region30: #{tpu_custom_call.1} parent=1 // pred_check
      _
    $region31: #{tpu_custom_call.1} parent=1 // pred_check_branch
      %710 = sbr.rel (0) target = $region33
    $region32: #{tpu_custom_call.1} parent=1 // pred_region
      %712 = dma.done [#allocation9], 512
    $region33: #{tpu_custom_call.1} parent=1 // pred_fallthru
      _
    %713 = vsyncpa [#allocation3], 1
    %714 = vsyncpa [#allocation6], 1
    %715 = vsyncpa [#allocation4], 1
    %716 = vsyncpa [#allocation9], 1

</llo_original>
